<compile_context>
chip_gen: v6e
topology: v6e:2x2x1
jax: 0.10.0
libtpu: 0.0.40
codegen_flags: <defaults>
</compile_context>

<pallas_src>
import functools

import jax
import jax.numpy as jnp
from jax import lax
from jax.experimental import pallas as pl
from jax.experimental.pallas import tpu as pltpu


# --------------------------- chip-aware tuning ------------------------------ #

@functools.lru_cache(maxsize=1)
def _tuning():
    """Block-size / VMEM-limit constants per TPU generation."""
    try:
        vmem = pltpu.get_tpu_info().vmem_capacity_bytes
    except Exception:
        vmem = 64 * 1024 * 1024                      # conservative (v7x-sized) fallback
    if vmem >= 100 * 1024 * 1024:                    # v5e / v6e: 128 MiB VMEM per TC
        return dict(block_bytes=8 * 1024 * 1024,     # ~8 MiB x tiles
                    vmem_limit=80 * 1024 * 1024,
                    fused_max_f32_bytes=24 * 1024 * 1024)
    # v7x: 64 MiB VMEM per TC -> smaller tiles, smaller resident threshold
    return dict(block_bytes=4 * 1024 * 1024,
                vmem_limit=48 * 1024 * 1024,
                fused_max_f32_bytes=12 * 1024 * 1024)


# ----------------------------- Pallas kernels ------------------------------ #

def fused_se_kernel(x_ref, w1_ref, b1_ref, w2_ref, b2_ref, o_ref, *, inv_s):
    """Whole-array SE (x resident in VMEM): pool -> fc1 -> relu -> fc2 -> sigmoid -> scale."""
    xf = x_ref[...].astype(jnp.float32)                                  # (B, C, S)
    pooled = jnp.sum(xf, axis=2) * inv_s                                 # (B, C)
    h = jnp.dot(pooled, w1_ref[...], preferred_element_type=jnp.float32) + b1_ref[...]
    h = jnp.maximum(h, 0.0)                                              # (B, C//r)
    g = jnp.dot(h, w2_ref[...], preferred_element_type=jnp.float32) + b2_ref[...]
    gate = jax.nn.sigmoid(g)                                             # (B, C) f32
    o_ref[...] = (xf * gate[:, :, None]).astype(o_ref.dtype)


def pool_sum_kernel(x_ref, part_ref, acc_ref, *, total_s, tile_s,
                    tiles_per_core, needs_mask):
    """Streamed per-(sample, channel) spatial sum, 2-way split across cores.

    x_ref:    (B, C, TILE_S) spatial tile
    part_ref: (1, B, C)      this core-shard's partial sum (written at last step)
    acc_ref:  (B, C, TILE_S) lane-wide f32 accumulator (pure VPU adds per step)
    """
    c = pl.program_id(0)          # core-shard axis ("parallel" -> megacore on v7x)
    t = pl.program_id(1)          # spatial tiles within the shard (reduction)

    @pl.when(t == 0)
    def _init():
        acc_ref[...] = jnp.zeros_like(acc_ref)

    x = x_ref[...].astype(jnp.float32)
    if needs_mask:
        # Ragged tail and/or phantom grid slots: zero out lanes past the true S.
        start = (c * tiles_per_core + t) * tile_s
        lane = lax.broadcasted_iota(jnp.int32, x_ref.shape, 2)
        x = jnp.where(start + lane < total_s, x, 0.0)
    acc_ref[...] += x

    @pl.when(t == pl.num_programs(1) - 1)
    def _finalize():
        part_ref[0] = jnp.sum(acc_ref[...], axis=2)   # single cross-lane reduce


def scale_kernel(x_ref, gate_ref, o_ref):
    """out = x * gate, streamed over spatial tiles (gate kept f32 through the multiply)."""
    o_ref[...] = (x_ref[...] * gate_ref[...]).astype(o_ref.dtype)


# ------------------------------ JAX wrapper --------------------------------- #

@jax.jit
def se_layer(x_ncdhw, params):
    """SELayer forward.  x_ncdhw: (B, C, D, H, W)."""
    B, C, D, H, W = x_ncdhw.shape
    S = D * H * W
    hidden = params["fc1w"].shape[1]
    cfg = _tuning()

    x = x_ncdhw.reshape(B, C, S)          # NCDHW viewed lane-dense as (B, C, S)
    itemsize = x.dtype.itemsize

    w1 = params["fc1w"].astype(jnp.float32)                   # (C, hidden)
    b1 = params["fc1b"].reshape(1, hidden).astype(jnp.float32)
    w2 = params["fc2w"].astype(jnp.float32)                   # (hidden, C)
    b2 = params["fc2b"].reshape(1, C).astype(jnp.float32)

    f32_equiv_bytes = B * C * S * 4

    # ---------------- fused single-pass path (x fits in VMEM) ---------------- #
    if f32_equiv_bytes <= cfg["fused_max_f32_bytes"]:
        cost = pl.CostEstimate(
            flops=3 * B * C * S + 4 * B * C * hidden,
            transcendentals=B * C,
            bytes_accessed=2 * B * C * S * itemsize)
        out = pl.pallas_call(
            functools.partial(fused_se_kernel, inv_s=1.0 / S),
            out_shape=jax.ShapeDtypeStruct((B, C, S), x.dtype),
            compiler_params=pltpu.CompilerParams(
                vmem_limit_bytes=cfg["vmem_limit"]),
            cost_estimate=cost,
        )(x, w1, b1, w2, b2)
        return out.reshape(B, C, D, H, W)

    # --------------------- streamed two-pass path ---------------------------- #
    # Large lane-aligned spatial tiles (~block_bytes of x per block).
    lanes = max(128, (cfg["block_bytes"] // (B * C * itemsize)) // 128 * 128)
    TILE_S = min(lanes, 128 * pl.cdiv(S, 128))
    num_tiles = pl.cdiv(S, TILE_S)
    num_core_split = 2 if num_tiles >= 2 else 1
    tiles_per_core = pl.cdiv(num_tiles, num_core_split)
    # Mask needed if the last real tile is ragged or a phantom grid slot exists.
    needs_mask = (num_core_split * tiles_per_core * TILE_S) != S

    def x_map(c, t):
        # Clamp phantom slots onto the last real tile (their lanes are masked).
        return (0, 0, jnp.minimum(c * tiles_per_core + t, num_tiles - 1))

    # ---- pass A: streamed global sum (split across TensorCores on v7x) ----
    cost_a = pl.CostEstimate(flops=B * C * S, transcendentals=0,
                             bytes_accessed=B * C * S * itemsize)
    partials = pl.pallas_call(
        functools.partial(pool_sum_kernel, total_s=S, tile_s=TILE_S,
                          tiles_per_core=tiles_per_core, needs_mask=needs_mask),
        out_shape=jax.ShapeDtypeStruct((num_core_split, B, C), jnp.float32),
        grid_spec=pltpu.PrefetchScalarGridSpec(
            num_scalar_prefetch=0,
            grid=(num_core_split, tiles_per_core),
            in_specs=[pl.BlockSpec((B, C, TILE_S), x_map)],
            out_specs=pl.BlockSpec((1, B, C), lambda c, t: (c, 0, 0)),
            scratch_shapes=[pltpu.VMEM((B, C, TILE_S), jnp.float32)],
        ),
        compiler_params=pltpu.CompilerParams(
            dimension_semantics=("parallel", "arbitrary"),
            vmem_limit_bytes=cfg["vmem_limit"]),
        cost_estimate=cost_a,
    )(x)

    # Tiny FC stack on the pooled means — negligible, plain XLA between passes.
    pooled = partials.sum(axis=0) * (1.0 / S)                             # (B, C)
    h = jnp.maximum(jnp.dot(pooled, w1, preferred_element_type=jnp.float32) + b1, 0.0)
    gate = jax.nn.sigmoid(jnp.dot(h, w2, preferred_element_type=jnp.float32) + b2)
    gate3 = gate.reshape(B, C, 1).astype(jnp.float32)

    # ---- pass B: streamed gating multiply (both TCs via "parallel") ----
    cost_b = pl.CostEstimate(flops=B * C * S, transcendentals=0,
                             bytes_accessed=2 * B * C * S * itemsize)
    out = pl.pallas_call(
        scale_kernel,
        out_shape=jax.ShapeDtypeStruct((B, C, S), x.dtype),
        grid_spec=pltpu.PrefetchScalarGridSpec(
            num_scalar_prefetch=0,
            grid=(num_tiles,),
            in_specs=[pl.BlockSpec((B, C, TILE_S), lambda s: (0, 0, s)),
                      pl.BlockSpec((B, C, 1), lambda s: (0, 0, 0))],
            out_specs=pl.BlockSpec((B, C, TILE_S), lambda s: (0, 0, s)),
        ),
        compiler_params=pltpu.CompilerParams(
            dimension_semantics=("parallel",),
            vmem_limit_bytes=cfg["vmem_limit"]),
        cost_estimate=cost_b,
    )(x, gate3)

    return out.reshape(B, C, D, H, W)


# ------------------------------- main --------------------------------------- #

if __name__ == "__main__":
    key = jax.random.PRNGKey(0)
    B, C, reduction = 2, 32, 16
    hidden = C // reduction

    ks = jax.random.split(key, 5)
    params = {
        # SELayer fc: Linear(C, C//r) -> ReLU -> Linear(C//r, C) -> Sigmoid
        # (weights stored (in, out), i.e. already transposed vs torch.nn.Linear)
        "fc1w": 0.1 * jax.random.normal(ks[1], (C, hidden), jnp.float32),
        "fc1b": 0.1 * jax.random.normal(ks[2], (hidden,), jnp.float32),
        "fc2w": 0.1 * jax.random.normal(ks[3], (hidden, C), jnp.float32),
        "fc2b": 0.1 * jax.random.normal(ks[4], (C,), jnp.float32),
    }

    def reference(x):
        pooled = x.mean(axis=(2, 3, 4))                                   # (B, C)
        h = jnp.maximum(pooled @ params["fc1w"] + params["fc1b"], 0.0)
        g = jax.nn.sigmoid(h @ params["fc2w"] + params["fc2b"])
        return x * g[:, :, None, None, None]

    # Small NCDHW input -> fused single-pass kernel (x resident in VMEM).
    x_small = jax.random.normal(ks[0], (B, C, 8, 16, 16), jnp.float32)
    out_small = se_layer(x_small, params)
    jax.block_until_ready(out_small)
    assert out_small.shape == x_small.shape
    assert jnp.allclose(out_small, reference(x_small), atol=1e-4, rtol=1e-4)

    # Larger, ragged input -> streamed two-pass path (split pool, masked tail,
    # no jnp.pad / slice copies).
    x_big = jax.random.normal(ks[0], (B, C, 7, 128, 128), jnp.float32)
    out_big = se_layer(x_big, params)
    jax.block_until_ready(out_big)
    assert out_big.shape == x_big.shape
    assert jnp.allclose(out_big, reference(x_big), atol=1e-4, rtol=1e-4)

    print("KERNEL_OK")
</pallas_src>

<mosaic_0001>
module attributes {stable_mosaic.version = 11 : i64} {
  func.func @fused_se_kernel(%arg0: memref<2x32x2048xf32, #tpu.memory_space<vmem>>, %arg1: memref<32x2xf32, #tpu.memory_space<vmem>>, %arg2: memref<1x2xf32, #tpu.memory_space<vmem>>, %arg3: memref<2x32xf32, #tpu.memory_space<vmem>>, %arg4: memref<1x32xf32, #tpu.memory_space<vmem>>, %arg5: memref<2x32x2048xf32, #tpu.memory_space<vmem>>) attributes {dimension_semantics = [], scalar_prefetch = 0 : i64, scratch_operands = 0 : i64, tpu.core_type = #tpu.core_type<tc>} {
    %c0 = arith.constant 0 : index
    %c0_0 = arith.constant 0 : index
    %c0_1 = arith.constant 0 : index
    %0 = vector.load %arg0[%c0, %c0_0, %c0_1] : memref<2x32x2048xf32, #tpu.memory_space<vmem>>, vector<2x32x2048xf32>
    %cst = arith.constant dense<0.000000e+00> : vector<2x32xf32>
    %1 = vector.multi_reduction <add>, %0, %cst [2] : vector<2x32x2048xf32> to vector<2x32xf32>
    %cst_2 = arith.constant 4.8828125E-4 : f32
    %2 = vector.broadcast %cst_2 : f32 to vector<2x32xf32>
    %3 = arith.mulf %1, %2 : vector<2x32xf32>
    %c0_3 = arith.constant 0 : index
    %c0_4 = arith.constant 0 : index
    %4 = vector.load %arg1[%c0_3, %c0_4] : memref<32x2xf32, #tpu.memory_space<vmem>>, vector<32x2xf32>
    %cst_5 = arith.constant dense<0.000000e+00> : vector<2x2xf32>
    %5 = tpu.matmul %3, %4, %cst_5 {dimension_numbers = #tpu.dot_dimension_numbers<[1], [0], [0], [1], [0, 0, 1, 1], [], []>} : vector<2x32xf32>, vector<32x2xf32>, vector<2x2xf32> -> vector<2x2xf32>
    %c0_6 = arith.constant 0 : index
    %c0_7 = arith.constant 0 : index
    %6 = vector.load %arg2[%c0_6, %c0_7] : memref<1x2xf32, #tpu.memory_space<vmem>>, vector<1x2xf32>
    %7 = vector.broadcast %6 : vector<1x2xf32> to vector<2x2xf32>
    %8 = arith.addf %5, %7 : vector<2x2xf32>
    %cst_8 = arith.constant 0.000000e+00 : f32
    %9 = vector.broadcast %cst_8 : f32 to vector<2x2xf32>
    %10 = arith.maximumf %8, %9 : vector<2x2xf32>
    %c0_9 = arith.constant 0 : index
    %c0_10 = arith.constant 0 : index
    %11 = vector.load %arg3[%c0_9, %c0_10] : memref<2x32xf32, #tpu.memory_space<vmem>>, vector<2x32xf32>
    %cst_11 = arith.constant dense<0.000000e+00> : vector<2x32xf32>
    %12 = tpu.matmul %10, %11, %cst_11 {dimension_numbers = #tpu.dot_dimension_numbers<[1], [0], [0], [1], [0, 0, 1, 1], [], []>} : vector<2x2xf32>, vector<2x32xf32>, vector<2x32xf32> -> vector<2x32xf32>
    %c0_12 = arith.constant 0 : index
    %c0_13 = arith.constant 0 : index
    %13 = vector.load %arg4[%c0_12, %c0_13] : memref<1x32xf32, #tpu.memory_space<vmem>>, vector<1x32xf32>
    %14 = vector.broadcast %13 : vector<1x32xf32> to vector<2x32xf32>
    %15 = arith.addf %12, %14 : vector<2x32xf32>
    %16 = arith.negf %15 : vector<2x32xf32>
    %17 = math.exp %16 : vector<2x32xf32>
    %cst_14 = arith.constant 1.000000e+00 : f32
    %18 = vector.broadcast %cst_14 : f32 to vector<2x32xf32>
    %19 = arith.addf %18, %17 : vector<2x32xf32>
    %20 = arith.divf %18, %19 : vector<2x32xf32>
    %21 = vector.shape_cast %20 : vector<2x32xf32> to vector<2x32x1xf32>
    %22 = vector.broadcast %21 : vector<2x32x1xf32> to vector<2x32x2048xf32>
    %23 = arith.mulf %0, %22 : vector<2x32x2048xf32>
    %c0_15 = arith.constant 0 : index
    %c0_16 = arith.constant 0 : index
    %c0_17 = arith.constant 0 : index
    %24 = vector.load %arg5[%c0_15, %c0_16, %c0_17] : memref<2x32x2048xf32, #tpu.memory_space<vmem>>, vector<2x32x2048xf32>
    tpu.vector_store %arg5[%c0_15, %c0_16, %c0_17], %23 {strides = array<i32>} : memref<2x32x2048xf32, #tpu.memory_space<vmem>>, vector<2x32x2048xf32>,
    return
  }
}

</mosaic_0001>

<llo_original>
// kernel: se_layer.1
$region0: #{se_layer.1}
  #allocation0 [shape = 'u32[]', space=smem, size = 0x4, offset = 0x4, fixed_abs, tag = 'smem constant byte address 0x4 - core index']
  #allocation1 [shape = 'u32[144,128]{1,0:T(1,128)}', space=vmem, size = 0x12000, scoped, tag = 'internal scratch']
  %s0 = inlined_call_operand.vmem [shape: f32[2,32,2048], index: 0, kind: input, shape index: {}]
  %s1 = inlined_call_operand.vmem [shape: f32[32,2], index: 1, kind: input, shape index: {}]
  %s2 = inlined_call_operand.vmem [shape: f32[1,2], index: 2, kind: input, shape index: {}]
  %s3 = inlined_call_operand.vmem [shape: f32[2,32], index: 3, kind: input, shape index: {}]
  %s4 = inlined_call_operand.vmem [shape: f32[1,32], index: 4, kind: input, shape index: {}]
  %s5 = inlined_call_operand.vmem [shape: f32[2,32,2048], index: 5, kind: output, shape index: {}]
  %s6 = sld [smem:[#allocation0]]
  $region30: #{se_layer.1} parent=0
    _
  %s8 = ssub.s32 1, %s6
  %s9 = scalar_select 0, %s8, %s6
  // Predicated region
  $region2: #{se_layer.1} parent=0 // pred_check
    _
  $region3: #{se_layer.1} parent=0 // pred_check_branch
    %11 = sbr.rel (0) target = $region5
  $region4: #{se_layer.1} parent=0 // pred_region
    _
  $region5: #{se_layer.1} parent=0 // pred_fallthru
    _
  // Predicated region
  $region6: #{se_layer.1} parent=0 // pred_check
    _
  $region7: #{se_layer.1} parent=0 // pred_check_branch
    %13 = sbr.rel (0) target = $region9
  $region8: #{se_layer.1} parent=0 // pred_region
    _
  $region9: #{se_layer.1} parent=0 // pred_fallthru
    _
  // Predicated region
  $region10: #{se_layer.1} parent=0 // pred_check
    _
  $region11: #{se_layer.1} parent=0 // pred_check_branch
    %15 = sbr.rel (0) target = $region13
  $region12: #{se_layer.1} parent=0 // pred_region
    _
  $region13: #{se_layer.1} parent=0 // pred_fallthru
    _
  // Predicated region
  $region14: #{se_layer.1} parent=0 // pred_check
    _
  $region15: #{se_layer.1} parent=0 // pred_check_branch
    %17 = sbr.rel (0) target = $region17
  $region16: #{se_layer.1} parent=0 // pred_region
    _
  $region17: #{se_layer.1} parent=0 // pred_fallthru
    _
  // Predicated region
  $region18: #{se_layer.1} parent=0 // pred_check
    _
  $region19: #{se_layer.1} parent=0 // pred_check_branch
    %19 = sbr.rel (0) target = $region21
  $region20: #{se_layer.1} parent=0 // pred_region
    _
  $region21: #{se_layer.1} parent=0 // pred_fallthru
    _
  %v20 = vld [vmem:[%s0] sm:$0xff]
  %v21 = vld [vmem:[%s0 + $0x8] sm:$0xff]
  %v22 = vld [vmem:[%s0 + $0x10] sm:$0xff]
  %v23 = vld [vmem:[%s0 + $0x18] sm:$0xff]
  %v24 = vld [vmem:[%s0 + $0x20] sm:$0xff]
  %v25 = vld [vmem:[%s0 + $0x28] sm:$0xff]
  %v26 = vld [vmem:[%s0 + $0x30] sm:$0xff]
  %v27 = vld [vmem:[%s0 + $0x38] sm:$0xff]
  %v28 = vld [vmem:[%s0 + $0x40] sm:$0xff]
  %v29 = vld [vmem:[%s0 + $0x48] sm:$0xff]
  %v30 = vld [vmem:[%s0 + $0x50] sm:$0xff]
  %v31 = vld [vmem:[%s0 + $0x58] sm:$0xff]
  %v32 = vld [vmem:[%s0 + $0x60] sm:$0xff]
  %v33 = vld [vmem:[%s0 + $0x68] sm:$0xff]
  %v34 = vld [vmem:[%s0 + $0x70] sm:$0xff]
  %v35 = vld [vmem:[%s0 + $0x78] sm:$0xff]
  %v36 = vld [vmem:[%s0 + $0x80] sm:$0xff]
  %v37 = vld [vmem:[%s0 + $0x88] sm:$0xff]
  %v38 = vld [vmem:[%s0 + $0x90] sm:$0xff]
  %v39 = vld [vmem:[%s0 + $0x98] sm:$0xff]
  %v40 = vld [vmem:[%s0 + $0xa0] sm:$0xff]
  %v41 = vld [vmem:[%s0 + $0xa8] sm:$0xff]
  %v42 = vld [vmem:[%s0 + $0xb0] sm:$0xff]
  %v43 = vld [vmem:[%s0 + $0xb8] sm:$0xff]
  %v44 = vld [vmem:[%s0 + $0xc0] sm:$0xff]
  %v45 = vld [vmem:[%s0 + $0xc8] sm:$0xff]
  %v46 = vld [vmem:[%s0 + $0xd0] sm:$0xff]
  %v47 = vld [vmem:[%s0 + $0xd8] sm:$0xff]
  %v48 = vld [vmem:[%s0 + $0xe0] sm:$0xff]
  %v49 = vld [vmem:[%s0 + $0xe8] sm:$0xff]
  %v50 = vld [vmem:[%s0 + $0xf0] sm:$0xff]
  %v51 = vld [vmem:[%s0 + $0xf8] sm:$0xff]
  %v52 = vld [vmem:[%s0 + $0x100] sm:$0xff]
  %v53 = vld [vmem:[%s0 + $0x108] sm:$0xff]
  %v54 = vld [vmem:[%s0 + $0x110] sm:$0xff]
  %v55 = vld [vmem:[%s0 + $0x118] sm:$0xff]
  %v56 = vld [vmem:[%s0 + $0x120] sm:$0xff]
  %v57 = vld [vmem:[%s0 + $0x128] sm:$0xff]
  %v58 = vld [vmem:[%s0 + $0x130] sm:$0xff]
  %v59 = vld [vmem:[%s0 + $0x138] sm:$0xff]
  %v60 = vld [vmem:[%s0 + $0x140] sm:$0xff]
  %v61 = vld [vmem:[%s0 + $0x148] sm:$0xff]
  %v62 = vld [vmem:[%s0 + $0x150] sm:$0xff]
  %v63 = vld [vmem:[%s0 + $0x158] sm:$0xff]
  %v64 = vld [vmem:[%s0 + $0x160] sm:$0xff]
  %v65 = vld [vmem:[%s0 + $0x168] sm:$0xff]
  %v66 = vld [vmem:[%s0 + $0x170] sm:$0xff]
  %v67 = vld [vmem:[%s0 + $0x178] sm:$0xff]
  %v68 = vld [vmem:[%s0 + $0x180] sm:$0xff]
  %v69 = vld [vmem:[%s0 + $0x188] sm:$0xff]
  %v70 = vld [vmem:[%s0 + $0x190] sm:$0xff]
  %v71 = vld [vmem:[%s0 + $0x198] sm:$0xff]
  %v72 = vld [vmem:[%s0 + $0x1a0] sm:$0xff]
  %v73 = vld [vmem:[%s0 + $0x1a8] sm:$0xff]
  %v74 = vld [vmem:[%s0 + $0x1b0] sm:$0xff]
  %v75 = vld [vmem:[%s0 + $0x1b8] sm:$0xff]
  %v76 = vld [vmem:[%s0 + $0x1c0] sm:$0xff]
  %v77 = vld [vmem:[%s0 + $0x1c8] sm:$0xff]
  %v78 = vld [vmem:[%s0 + $0x1d0] sm:$0xff]
  %v79 = vld [vmem:[%s0 + $0x1d8] sm:$0xff]
  %v80 = vld [vmem:[%s0 + $0x1e0] sm:$0xff]
  %v81 = vld [vmem:[%s0 + $0x1e8] sm:$0xff]
  %v82 = vld [vmem:[%s0 + $0x1f0] sm:$0xff]
  %v83 = vld [vmem:[%s0 + $0x1f8] sm:$0xff]
  %v84 = vld [vmem:[%s0 + $0x200] sm:$0xff]
  %v85 = vld [vmem:[%s0 + $0x208] sm:$0xff]
  %v86 = vld [vmem:[%s0 + $0x210] sm:$0xff]
  %v87 = vld [vmem:[%s0 + $0x218] sm:$0xff]
  %v88 = vld [vmem:[%s0 + $0x220] sm:$0xff]
  %v89 = vld [vmem:[%s0 + $0x228] sm:$0xff]
  %v90 = vld [vmem:[%s0 + $0x230] sm:$0xff]
  %v91 = vld [vmem:[%s0 + $0x238] sm:$0xff]
  %v92 = vld [vmem:[%s0 + $0x240] sm:$0xff]
  %v93 = vld [vmem:[%s0 + $0x248] sm:$0xff]
  %v94 = vld [vmem:[%s0 + $0x250] sm:$0xff]
  %v95 = vld [vmem:[%s0 + $0x258] sm:$0xff]
  %v96 = vld [vmem:[%s0 + $0x260] sm:$0xff]
  %v97 = vld [vmem:[%s0 + $0x268] sm:$0xff]
  %v98 = vld [vmem:[%s0 + $0x270] sm:$0xff]
  %v99 = vld [vmem:[%s0 + $0x278] sm:$0xff]
  %v100 = vld [vmem:[%s0 + $0x280] sm:$0xff]
  %v101 = vld [vmem:[%s0 + $0x288] sm:$0xff]
  %v102 = vld [vmem:[%s0 + $0x290] sm:$0xff]
  %v103 = vld [vmem:[%s0 + $0x298] sm:$0xff]
  %v104 = vld [vmem:[%s0 + $0x2a0] sm:$0xff]
  %v105 = vld [vmem:[%s0 + $0x2a8] sm:$0xff]
  %v106 = vld [vmem:[%s0 + $0x2b0] sm:$0xff]
  %v107 = vld [vmem:[%s0 + $0x2b8] sm:$0xff]
  %v108 = vld [vmem:[%s0 + $0x2c0] sm:$0xff]
  %v109 = vld [vmem:[%s0 + $0x2c8] sm:$0xff]
  %v110 = vld [vmem:[%s0 + $0x2d0] sm:$0xff]
  %v111 = vld [vmem:[%s0 + $0x2d8] sm:$0xff]
  %v112 = vld [vmem:[%s0 + $0x2e0] sm:$0xff]
  %v113 = vld [vmem:[%s0 + $0x2e8] sm:$0xff]
  %v114 = vld [vmem:[%s0 + $0x2f0] sm:$0xff]
  %v115 = vld [vmem:[%s0 + $0x2f8] sm:$0xff]
  %v116 = vld [vmem:[%s0 + $0x300] sm:$0xff]
  %v117 = vld [vmem:[%s0 + $0x308] sm:$0xff]
  %v118 = vld [vmem:[%s0 + $0x310] sm:$0xff]
  %v119 = vld [vmem:[%s0 + $0x318] sm:$0xff]
  %v120 = vld [vmem:[%s0 + $0x320] sm:$0xff]
  %v121 = vld [vmem:[%s0 + $0x328] sm:$0xff]
  %v122 = vld [vmem:[%s0 + $0x330] sm:$0xff]
  %v123 = vld [vmem:[%s0 + $0x338] sm:$0xff]
  %v124 = vld [vmem:[%s0 + $0x340] sm:$0xff]
  %v125 = vld [vmem:[%s0 + $0x348] sm:$0xff]
  %v126 = vld [vmem:[%s0 + $0x350] sm:$0xff]
  %v127 = vld [vmem:[%s0 + $0x358] sm:$0xff]
  %v128 = vld [vmem:[%s0 + $0x360] sm:$0xff]
  %v129 = vld [vmem:[%s0 + $0x368] sm:$0xff]
  %v130 = vld [vmem:[%s0 + $0x370] sm:$0xff]
  %v131 = vld [vmem:[%s0 + $0x378] sm:$0xff]
  %v132 = vld [vmem:[%s0 + $0x380] sm:$0xff]
  %v133 = vld [vmem:[%s0 + $0x388] sm:$0xff]
  %v134 = vld [vmem:[%s0 + $0x390] sm:$0xff]
  %v135 = vld [vmem:[%s0 + $0x398] sm:$0xff]
  %v136 = vld [vmem:[%s0 + $0x3a0] sm:$0xff]
  %v137 = vld [vmem:[%s0 + $0x3a8] sm:$0xff]
  %v138 = vld [vmem:[%s0 + $0x3b0] sm:$0xff]
  %v139 = vld [vmem:[%s0 + $0x3b8] sm:$0xff]
  %v140 = vld [vmem:[%s0 + $0x3c0] sm:$0xff]
  %v141 = vld [vmem:[%s0 + $0x3c8] sm:$0xff]
  %v142 = vld [vmem:[%s0 + $0x3d0] sm:$0xff]
  %v143 = vld [vmem:[%s0 + $0x3d8] sm:$0xff]
  %v144 = vld [vmem:[%s0 + $0x3e0] sm:$0xff]
  %v145 = vld [vmem:[%s0 + $0x3e8] sm:$0xff]
  %v146 = vld [vmem:[%s0 + $0x3f0] sm:$0xff]
  %v147 = vld [vmem:[%s0 + $0x3f8] sm:$0xff]
  %v148 = vadd.f32 %v20, %v21
  %v149 = vadd.f32 %v148, %v22
  %v150 = vadd.f32 %v149, %v23
  %v151 = vadd.f32 %v150, %v24
  %v152 = vadd.f32 %v151, %v25
  %v153 = vadd.f32 %v152, %v26
  %v154 = vadd.f32 %v153, %v27
  %v155 = vadd.f32 %v154, %v28
  %v156 = vadd.f32 %v155, %v29
  %v157 = vadd.f32 %v156, %v30
  %v158 = vadd.f32 %v157, %v31
  %v159 = vadd.f32 %v158, %v32
  %v160 = vadd.f32 %v159, %v33
  %v161 = vadd.f32 %v160, %v34
  %v162 = vadd.f32 %v161, %v35
  %163 = vadd.xlane.f32.xlu0 %v162
  %v164 = vpop.xlane.xlu0 %163
  %v165 = vadd.f32 %v36, %v37
  %v166 = vadd.f32 %v165, %v38
  %v167 = vadd.f32 %v166, %v39
  %v168 = vadd.f32 %v167, %v40
  %v169 = vadd.f32 %v168, %v41
  %v170 = vadd.f32 %v169, %v42
  %v171 = vadd.f32 %v170, %v43
  %v172 = vadd.f32 %v171, %v44
  %v173 = vadd.f32 %v172, %v45
  %v174 = vadd.f32 %v173, %v46
  %v175 = vadd.f32 %v174, %v47
  %v176 = vadd.f32 %v175, %v48
  %v177 = vadd.f32 %v176, %v49
  %v178 = vadd.f32 %v177, %v50
  %v179 = vadd.f32 %v178, %v51
  %180 = vadd.xlane.f32.xlu0 %v179
  %v181 = vpop.xlane.xlu0 %180
  %v182 = vadd.f32 %v52, %v53
  %v183 = vadd.f32 %v182, %v54
  %v184 = vadd.f32 %v183, %v55
  %v185 = vadd.f32 %v184, %v56
  %v186 = vadd.f32 %v185, %v57
  %v187 = vadd.f32 %v186, %v58
  %v188 = vadd.f32 %v187, %v59
  %v189 = vadd.f32 %v188, %v60
  %v190 = vadd.f32 %v189, %v61
  %v191 = vadd.f32 %v190, %v62
  %v192 = vadd.f32 %v191, %v63
  %v193 = vadd.f32 %v192, %v64
  %v194 = vadd.f32 %v193, %v65
  %v195 = vadd.f32 %v194, %v66
  %v196 = vadd.f32 %v195, %v67
  %197 = vadd.xlane.f32.xlu0 %v196
  %v198 = vpop.xlane.xlu0 %197
  %v199 = vadd.f32 %v68, %v69
  %v200 = vadd.f32 %v199, %v70
  %v201 = vadd.f32 %v200, %v71
  %v202 = vadd.f32 %v201, %v72
  %v203 = vadd.f32 %v202, %v73
  %v204 = vadd.f32 %v203, %v74
  %v205 = vadd.f32 %v204, %v75
  %v206 = vadd.f32 %v205, %v76
  %v207 = vadd.f32 %v206, %v77
  %v208 = vadd.f32 %v207, %v78
  %v209 = vadd.f32 %v208, %v79
  %v210 = vadd.f32 %v209, %v80
  %v211 = vadd.f32 %v210, %v81
  %v212 = vadd.f32 %v211, %v82
  %v213 = vadd.f32 %v212, %v83
  %214 = vadd.xlane.f32.xlu0 %v213
  %v215 = vpop.xlane.xlu0 %214
  %v216 = vadd.f32 %v84, %v85
  %v217 = vadd.f32 %v216, %v86
  %v218 = vadd.f32 %v217, %v87
  %v219 = vadd.f32 %v218, %v88
  %v220 = vadd.f32 %v219, %v89
  %v221 = vadd.f32 %v220, %v90
  %v222 = vadd.f32 %v221, %v91
  %v223 = vadd.f32 %v222, %v92
  %v224 = vadd.f32 %v223, %v93
  %v225 = vadd.f32 %v224, %v94
  %v226 = vadd.f32 %v225, %v95
  %v227 = vadd.f32 %v226, %v96
  %v228 = vadd.f32 %v227, %v97
  %v229 = vadd.f32 %v228, %v98
  %v230 = vadd.f32 %v229, %v99
  %231 = vadd.xlane.f32.xlu0 %v230
  %v232 = vpop.xlane.xlu0 %231
  %v233 = vadd.f32 %v100, %v101
  %v234 = vadd.f32 %v233, %v102
  %v235 = vadd.f32 %v234, %v103
  %v236 = vadd.f32 %v235, %v104
  %v237 = vadd.f32 %v236, %v105
  %v238 = vadd.f32 %v237, %v106
  %v239 = vadd.f32 %v238, %v107
  %v240 = vadd.f32 %v239, %v108
  %v241 = vadd.f32 %v240, %v109
  %v242 = vadd.f32 %v241, %v110
  %v243 = vadd.f32 %v242, %v111
  %v244 = vadd.f32 %v243, %v112
  %v245 = vadd.f32 %v244, %v113
  %v246 = vadd.f32 %v245, %v114
  %v247 = vadd.f32 %v246, %v115
  %248 = vadd.xlane.f32.xlu0 %v247
  %v249 = vpop.xlane.xlu0 %248
  %v250 = vadd.f32 %v116, %v117
  %v251 = vadd.f32 %v250, %v118
  %v252 = vadd.f32 %v251, %v119
  %v253 = vadd.f32 %v252, %v120
  %v254 = vadd.f32 %v253, %v121
  %v255 = vadd.f32 %v254, %v122
  %v256 = vadd.f32 %v255, %v123
  %v257 = vadd.f32 %v256, %v124
  %v258 = vadd.f32 %v257, %v125
  %v259 = vadd.f32 %v258, %v126
  %v260 = vadd.f32 %v259, %v127
  %v261 = vadd.f32 %v260, %v128
  %v262 = vadd.f32 %v261, %v129
  %v263 = vadd.f32 %v262, %v130
  %v264 = vadd.f32 %v263, %v131
  %265 = vadd.xlane.f32.xlu0 %v264
  %v266 = vpop.xlane.xlu0 %265
  %v267 = vadd.f32 %v132, %v133
  %v268 = vadd.f32 %v267, %v134
  %v269 = vadd.f32 %v268, %v135
  %v270 = vadd.f32 %v269, %v136
  %v271 = vadd.f32 %v270, %v137
  %v272 = vadd.f32 %v271, %v138
  %v273 = vadd.f32 %v272, %v139
  %v274 = vadd.f32 %v273, %v140
  %v275 = vadd.f32 %v274, %v141
  %v276 = vadd.f32 %v275, %v142
  %v277 = vadd.f32 %v276, %v143
  %v278 = vadd.f32 %v277, %v144
  %v279 = vadd.f32 %v278, %v145
  %v280 = vadd.f32 %v279, %v146
  %v281 = vadd.f32 %v280, %v147
  %282 = vadd.xlane.f32.xlu0 %v281
  %v283 = vpop.xlane.xlu0 %282
  %v284 = vmul.f32 %v164, 0.00048828125
  %v285 = vmul.f32 %v181, 0.00048828125
  %v286 = vmul.f32 %v198, 0.00048828125
  %v287 = vmul.f32 %v215, 0.00048828125
  %v288 = vmul.f32 %v232, 0.00048828125
  %v289 = vmul.f32 %v249, 0.00048828125
  %v290 = vmul.f32 %v266, 0.00048828125
  %v291 = vmul.f32 %v283, 0.00048828125
  %v292 = vld [vmem:[%s1] sm:$0xff]
  %v293 = vld [vmem:[%s1 + $0x8] sm:$0xff]
  %v294 = vld [vmem:[%s1 + $0x10] sm:$0xff]
  %v295 = vld [vmem:[%s1 + $0x18] sm:$0xff]
  %v296 = vld [vmem:[%s2] sm:$0x1]
  %v298 = vlaneseq
  %v299 = vshrl.u32 %v298, 7
  %v300 = vsub.s32 0, %v299
  %v301 = vrot.slane %v296, %v300
  %v311 = vlaneseq
  %v312 = vand.u32 %v311, 127
  %v313 = vlaneseq
  %v314 = vshrl.u32 %v313, 7
  %v315 = vsub.s32 %v312, %v314
  %v316 = vrot.slane %v284, %v315
  %v317 = vadd.s32 %v312, 4294967288
  %v318 = vlaneseq
  %v319 = vshrl.u32 %v318, 7
  %v320 = vsub.s32 %v317, %v319
  %v321 = vrot.slane %v285, %v320
  %vm322 = vcmask 130112
  %v323 = vsel %vm322, %v321, %v316
  %v324 = vadd.s32 %v312, 4294967280
  %v325 = vlaneseq
  %v326 = vshrl.u32 %v325, 7
  %v327 = vsub.s32 %v324, %v326
  %v328 = vrot.slane %v286, %v327
  %vm329 = vcmask 195712
  %v330 = vsel %vm329, %v328, %v323
  %v331 = vadd.s32 %v312, 4294967272
  %v332 = vlaneseq
  %v333 = vshrl.u32 %v332, 7
  %v334 = vsub.s32 %v331, %v333
  %v335 = vrot.slane %v287, %v334
  %vm336 = vcmask 261312
  %v337 = vsel %vm336, %v335, %v330
  %v338 = vlaneseq
  %v339 = vshrl.u32 %v338, 7
  %v340 = vsub.s32 %v312, %v339
  %v341 = vrot.slane %v288, %v340
  %v342 = vlaneseq
  %v343 = vshrl.u32 %v342, 7
  %v344 = vsub.s32 %v317, %v343
  %v345 = vrot.slane %v289, %v344
  %v346 = vsel %vm322, %v345, %v341
  %v347 = vlaneseq
  %v348 = vshrl.u32 %v347, 7
  %v349 = vsub.s32 %v324, %v348
  %v350 = vrot.slane %v290, %v349
  %v351 = vsel %vm329, %v350, %v346
  %v352 = vlaneseq
  %v353 = vshrl.u32 %v352, 7
  %v354 = vsub.s32 %v331, %v353
  %v355 = vrot.slane %v291, %v354
  %v356 = vsel %vm336, %v355, %v351
  %vm357 = vcmask 1041409
  %v358 = vsel %vm357, %v356, %v337
  %vm359 = vcmask 261120
  %v360 = vsel %vm359, %v358, 0
  %362 = vmatprep.subr.mxu0 0.0
  %363 = vmatpush1.msra.mxu0 0.0
  %364 = vmatprep.subr.mxu0 0.0
  %365 = vmatpush1.msra.mxu0 0.0
  %366 = vmatprep.subr.mxu0 0.0
  %367 = vmatpush1.msra.mxu0 0.0
  %368 = vmatprep.subr.mxu0 0.0
  %369 = vmatpush1.msra.mxu0 0.0
  %370 = vmatprep.subr.mxu0 0.0
  %371 = vmatpush1.msra.mxu0 0.0
  %372 = vmatprep.subr.mxu0 0.0
  %373 = vmatpush1.msra.mxu0 0.0
  %374 = vmatprep.subr.mxu0 0.0
  %375 = vmatpush1.msra.mxu0 0.0
  %376 = vmatprep.subr.mxu0 0.0
  %377 = vmatpush1.msra.mxu0 0.0
  %378 = vmatprep.subr.mxu0 0.0
  %379 = vmatpush1.msra.mxu0 0.0
  %380 = vmatprep.subr.mxu0 0.0
  %381 = vmatpush1.msra.mxu0 0.0
  %382 = vmatprep.subr.mxu0 0.0
  %383 = vmatpush1.msra.mxu0 0.0
  %384 = vmatprep.subr.mxu0 0.0
  %385 = vmatpush1.msra.mxu0 0.0
  %386 = vmatprep.subr.mxu0 0.0
  %387 = vmatpush1.msra.mxu0 %v295
  %388 = vmatprep.subr.mxu0 0.0
  %389 = vmatpush1.msra.mxu0 %v294
  %390 = vmatprep.subr.mxu0 0.0
  %391 = vmatpush1.msra.mxu0 %v293
  %392 = vmatprep.subr.mxu0 0.0
  %393 = vmatpush1.msra.mxu0 %v292
  %394 = vmatprep.subr.mxu0 0.0
  %395 = vmatpush2.msra.mxu0 0.0
  %396 = vmatprep.subr.mxu0 0.0
  %397 = vmatpush2.msra.mxu0 0.0
  %398 = vmatprep.subr.mxu0 0.0
  %399 = vmatpush2.msra.mxu0 0.0
  %400 = vmatprep.subr.mxu0 0.0
  %401 = vmatpush2.msra.mxu0 0.0
  %402 = vmatprep.subr.mxu0 0.0
  %403 = vmatpush2.msra.mxu0 0.0
  %404 = vmatprep.subr.mxu0 0.0
  %405 = vmatpush2.msra.mxu0 0.0
  %406 = vmatprep.subr.mxu0 0.0
  %407 = vmatpush2.msra.mxu0 0.0
  %408 = vmatprep.subr.mxu0 0.0
  %409 = vmatpush2.msra.mxu0 0.0
  %410 = vmatprep.subr.mxu0 0.0
  %411 = vmatpush2.msra.mxu0 0.0
  %412 = vmatprep.subr.mxu0 0.0
  %413 = vmatpush2.msra.mxu0 0.0
  %414 = vmatprep.subr.mxu0 0.0
  %415 = vmatpush2.msra.mxu0 0.0
  %416 = vmatprep.subr.mxu0 0.0
  %417 = vmatpush2.msra.mxu0 0.0
  %418 = vmatprep.subr.mxu0 0.0
  %419 = vmatpush2.msra.mxu0 0.0
  %420 = vmatprep.subr.mxu0 0.0
  %421 = vmatpush2.msra.mxu0 0.0
  %422 = vmatprep.subr.mxu0 0.0
  %423 = vmatpush2.msra.mxu0 0.0
  %424 = vmatprep.subr.mxu0 0.0
  %425 = vmatpush2.msra.mxu0 0.0
  %426 = vmatprep.mubr.f32.mxu0 0.0
  %427 = vmatmul.mubr.f32.gmra.mxu0 %v360
  %v428 = vpop.f32.mrf.mxu0
  %v429 = vadd.f32 %v301, %v428
  %v430 = vpop.f32.mrf.mxu0
  %431 = vdwg.mxu0
  %v432 = vmax.f32 %v429, 0.0
  %v433 = vld [vmem:[%s3] sm:$0x3]
  %v434 = vld [vmem:[%s4] sm:$0x1]
  %v436 = vlaneseq
  %v437 = vshrl.u32 %v436, 7
  %v438 = vsub.s32 0, %v437
  %v439 = vrot.slane %v434, %v438
  %vm441 = vcmask 15360
  %v443 = vsel %vm441, %v432, 0
  %vm445 = vcmask 1041408
  %v447 = vsel %vm445, %v433, 0
  %449 = vmatprep.subr.mxu0 0.0
  %450 = vmatpush1.msra.mxu0 0.0
  %451 = vmatprep.subr.mxu0 0.0
  %452 = vmatpush1.msra.mxu0 0.0
  %453 = vmatprep.subr.mxu0 0.0
  %454 = vmatpush1.msra.mxu0 0.0
  %455 = vmatprep.subr.mxu0 0.0
  %456 = vmatpush1.msra.mxu0 0.0
  %457 = vmatprep.subr.mxu0 0.0
  %458 = vmatpush1.msra.mxu0 0.0
  %459 = vmatprep.subr.mxu0 0.0
  %460 = vmatpush1.msra.mxu0 0.0
  %461 = vmatprep.subr.mxu0 0.0
  %462 = vmatpush1.msra.mxu0 0.0
  %463 = vmatprep.subr.mxu0 0.0
  %464 = vmatpush1.msra.mxu0 0.0
  %465 = vmatprep.subr.mxu0 0.0
  %466 = vmatpush1.msra.mxu0 0.0
  %467 = vmatprep.subr.mxu0 0.0
  %468 = vmatpush1.msra.mxu0 0.0
  %469 = vmatprep.subr.mxu0 0.0
  %470 = vmatpush1.msra.mxu0 0.0
  %471 = vmatprep.subr.mxu0 0.0
  %472 = vmatpush1.msra.mxu0 0.0
  %473 = vmatprep.subr.mxu0 0.0
  %474 = vmatpush1.msra.mxu0 0.0
  %475 = vmatprep.subr.mxu0 0.0
  %476 = vmatpush1.msra.mxu0 0.0
  %477 = vmatprep.subr.mxu0 0.0
  %478 = vmatpush1.msra.mxu0 0.0
  %479 = vmatprep.subr.mxu0 0.0
  %480 = vmatpush1.msra.mxu0 %v447
  %481 = vmatprep.subr.mxu0 0.0
  %482 = vmatpush2.msra.mxu0 0.0
  %483 = vmatprep.subr.mxu0 0.0
  %484 = vmatpush2.msra.mxu0 0.0
  %485 = vmatprep.subr.mxu0 0.0
  %486 = vmatpush2.msra.mxu0 0.0
  %487 = vmatprep.subr.mxu0 0.0
  %488 = vmatpush2.msra.mxu0 0.0
  %489 = vmatprep.subr.mxu0 0.0
  %490 = vmatpush2.msra.mxu0 0.0
  %491 = vmatprep.subr.mxu0 0.0
  %492 = vmatpush2.msra.mxu0 0.0
  %493 = vmatprep.subr.mxu0 0.0
  %494 = vmatpush2.msra.mxu0 0.0
  %495 = vmatprep.subr.mxu0 0.0
  %496 = vmatpush2.msra.mxu0 0.0
  %497 = vmatprep.subr.mxu0 0.0
  %498 = vmatpush2.msra.mxu0 0.0
  %499 = vmatprep.subr.mxu0 0.0
  %500 = vmatpush2.msra.mxu0 0.0
  %501 = vmatprep.subr.mxu0 0.0
  %502 = vmatpush2.msra.mxu0 0.0
  %503 = vmatprep.subr.mxu0 0.0
  %504 = vmatpush2.msra.mxu0 0.0
  %505 = vmatprep.subr.mxu0 0.0
  %506 = vmatpush2.msra.mxu0 0.0
  %507 = vmatprep.subr.mxu0 0.0
  %508 = vmatpush2.msra.mxu0 0.0
  %509 = vmatprep.subr.mxu0 0.0
  %510 = vmatpush2.msra.mxu0 0.0
  %511 = vmatprep.subr.mxu0 0.0
  %512 = vmatpush2.msra.mxu0 0.0
  %513 = vmatprep.mubr.f32.mxu0 0.0
  %514 = vmatmul.mubr.f32.gmra.mxu0 %v443
  %v515 = vpop.f32.mrf.mxu0
  %v516 = vadd.f32 %v439, %v515
  %v517 = vpop.f32.mrf.mxu0
  %518 = vdwg.mxu0
  %v519 = vxor.u32 %v516, 2147483648
  %v520 = vmul.f32 %v519, 1.442695
  %v521 = vpow.pop %v520
  %v522 = vadd.f32 %v521, 1.0
  %v523 = vrcp.pop %v522
  %v524 = vmul.f32 1.0, %v523
  %v525 = vlaneseq
  %v526 = vshrl.u32 %v525, 7
  %v527 = vsub.s32 0, %v526
  %v528 = vrot.slane %v524, %v527
  %530 = vbcast.lane.b32.xlu0 %v528, 256
  %v531 = vpop.permute.xlu0 %530
  %s533 = sor.u32 256, 8
  %534 = vbcast.lane.b32.xlu0 %v528, %s533
  %v535 = vpop.permute.xlu0 %534
  %s537 = sor.u32 256, 16
  %538 = vbcast.lane.b32.xlu0 %v528, %s537
  %v539 = vpop.permute.xlu0 %538
  %s541 = sor.u32 256, 24
  %542 = vbcast.lane.b32.xlu0 %v528, %s541
  %v543 = vpop.permute.xlu0 %542
  %v544 = vlaneseq
  %v545 = vshrl.u32 %v544, 7
  %v546 = vsub.s32 1, %v545
  %v547 = vrot.slane %v524, %v546
  %549 = vbcast.lane.b32.xlu0 %v547, 256
  %v550 = vpop.permute.xlu0 %549
  %s552 = sor.u32 256, 8
  %553 = vbcast.lane.b32.xlu0 %v547, %s552
  %v554 = vpop.permute.xlu0 %553
  %s556 = sor.u32 256, 16
  %557 = vbcast.lane.b32.xlu0 %v547, %s556
  %v558 = vpop.permute.xlu0 %557
  %s560 = sor.u32 256, 24
  %561 = vbcast.lane.b32.xlu0 %v547, %s560
  %v562 = vpop.permute.xlu0 %561
  %v563 = vmul.f32 %v20, %v531
  %v564 = vmul.f32 %v21, %v531
  %v565 = vmul.f32 %v22, %v531
  %v566 = vmul.f32 %v23, %v531
  %v567 = vmul.f32 %v24, %v531
  %v568 = vmul.f32 %v25, %v531
  %v569 = vmul.f32 %v26, %v531
  %v570 = vmul.f32 %v27, %v531
  %v571 = vmul.f32 %v28, %v531
  %v572 = vmul.f32 %v29, %v531
  %v573 = vmul.f32 %v30, %v531
  %v574 = vmul.f32 %v31, %v531
  %v575 = vmul.f32 %v32, %v531
  %v576 = vmul.f32 %v33, %v531
  %v577 = vmul.f32 %v34, %v531
  %v578 = vmul.f32 %v35, %v531
  %v579 = vmul.f32 %v36, %v535
  %v580 = vmul.f32 %v37, %v535
  %v581 = vmul.f32 %v38, %v535
  %v582 = vmul.f32 %v39, %v535
  %v583 = vmul.f32 %v40, %v535
  %v584 = vmul.f32 %v41, %v535
  %v585 = vmul.f32 %v42, %v535
  %v586 = vmul.f32 %v43, %v535
  %v587 = vmul.f32 %v44, %v535
  %v588 = vmul.f32 %v45, %v535
  %v589 = vmul.f32 %v46, %v535
  %v590 = vmul.f32 %v47, %v535
  %v591 = vmul.f32 %v48, %v535
  %v592 = vmul.f32 %v49, %v535
  %v593 = vmul.f32 %v50, %v535
  %v594 = vmul.f32 %v51, %v535
  %v595 = vmul.f32 %v52, %v539
  %v596 = vmul.f32 %v53, %v539
  %v597 = vmul.f32 %v54, %v539
  %v598 = vmul.f32 %v55, %v539
  %v599 = vmul.f32 %v56, %v539
  %v600 = vmul.f32 %v57, %v539
  %v601 = vmul.f32 %v58, %v539
  %v602 = vmul.f32 %v59, %v539
  %v603 = vmul.f32 %v60, %v539
  %v604 = vmul.f32 %v61, %v539
  %v605 = vmul.f32 %v62, %v539
  %v606 = vmul.f32 %v63, %v539
  %v607 = vmul.f32 %v64, %v539
  %v608 = vmul.f32 %v65, %v539
  %v609 = vmul.f32 %v66, %v539
  %v610 = vmul.f32 %v67, %v539
  %v611 = vmul.f32 %v68, %v543
  %v612 = vmul.f32 %v69, %v543
  %v613 = vmul.f32 %v70, %v543
  %v614 = vmul.f32 %v71, %v543
  %v615 = vmul.f32 %v72, %v543
  %v616 = vmul.f32 %v73, %v543
  %v617 = vmul.f32 %v74, %v543
  %v618 = vmul.f32 %v75, %v543
  %v619 = vmul.f32 %v76, %v543
  %v620 = vmul.f32 %v77, %v543
  %v621 = vmul.f32 %v78, %v543
  %v622 = vmul.f32 %v79, %v543
  %v623 = vmul.f32 %v80, %v543
  %v624 = vmul.f32 %v81, %v543
  %v625 = vmul.f32 %v82, %v543
  %v626 = vmul.f32 %v83, %v543
  %v627 = vmul.f32 %v84, %v550
  %v628 = vmul.f32 %v85, %v550
  %v629 = vmul.f32 %v86, %v550
  %v630 = vmul.f32 %v87, %v550
  %v631 = vmul.f32 %v88, %v550
  %v632 = vmul.f32 %v89, %v550
  %v633 = vmul.f32 %v90, %v550
  %v634 = vmul.f32 %v91, %v550
  %v635 = vmul.f32 %v92, %v550
  %v636 = vmul.f32 %v93, %v550
  %v637 = vmul.f32 %v94, %v550
  %v638 = vmul.f32 %v95, %v550
  %v639 = vmul.f32 %v96, %v550
  %v640 = vmul.f32 %v97, %v550
  %v641 = vmul.f32 %v98, %v550
  %v642 = vmul.f32 %v99, %v550
  %v643 = vmul.f32 %v100, %v554
  %v644 = vmul.f32 %v101, %v554
  %v645 = vmul.f32 %v102, %v554
  %v646 = vmul.f32 %v103, %v554
  %v647 = vmul.f32 %v104, %v554
  %v648 = vmul.f32 %v105, %v554
  %v649 = vmul.f32 %v106, %v554
  %v650 = vmul.f32 %v107, %v554
  %v651 = vmul.f32 %v108, %v554
  %v652 = vmul.f32 %v109, %v554
  %v653 = vmul.f32 %v110, %v554
  %v654 = vmul.f32 %v111, %v554
  %v655 = vmul.f32 %v112, %v554
  %v656 = vmul.f32 %v113, %v554
  %v657 = vmul.f32 %v114, %v554
  %v658 = vmul.f32 %v115, %v554
  %v659 = vmul.f32 %v116, %v558
  %v660 = vmul.f32 %v117, %v558
  %v661 = vmul.f32 %v118, %v558
  %v662 = vmul.f32 %v119, %v558
  %v663 = vmul.f32 %v120, %v558
  %v664 = vmul.f32 %v121, %v558
  %v665 = vmul.f32 %v122, %v558
  %v666 = vmul.f32 %v123, %v558
  %v667 = vmul.f32 %v124, %v558
  %v668 = vmul.f32 %v125, %v558
  %v669 = vmul.f32 %v126, %v558
  %v670 = vmul.f32 %v127, %v558
  %v671 = vmul.f32 %v128, %v558
  %v672 = vmul.f32 %v129, %v558
  %v673 = vmul.f32 %v130, %v558
  %v674 = vmul.f32 %v131, %v558
  %v675 = vmul.f32 %v132, %v562
  %v676 = vmul.f32 %v133, %v562
  %v677 = vmul.f32 %v134, %v562
  %v678 = vmul.f32 %v135, %v562
  %v679 = vmul.f32 %v136, %v562
  %v680 = vmul.f32 %v137, %v562
  %v681 = vmul.f32 %v138, %v562
  %v682 = vmul.f32 %v139, %v562
  %v683 = vmul.f32 %v140, %v562
  %v684 = vmul.f32 %v141, %v562
  %v685 = vmul.f32 %v142, %v562
  %v686 = vmul.f32 %v143, %v562
  %v687 = vmul.f32 %v144, %v562
  %v688 = vmul.f32 %v145, %v562
  %v689 = vmul.f32 %v146, %v562
  %v690 = vmul.f32 %v147, %v562
  %691 = vst [vmem:[%s5] sm:$0xff] %v563
  %692 = vst [vmem:[%s5 + $0x8] sm:$0xff] %v564
  %693 = vst [vmem:[%s5 + $0x10] sm:$0xff] %v565
  %694 = vst [vmem:[%s5 + $0x18] sm:$0xff] %v566
  %695 = vst [vmem:[%s5 + $0x20] sm:$0xff] %v567
  %696 = vst [vmem:[%s5 + $0x28] sm:$0xff] %v568
  %697 = vst [vmem:[%s5 + $0x30] sm:$0xff] %v569
  %698 = vst [vmem:[%s5 + $0x38] sm:$0xff] %v570
  %699 = vst [vmem:[%s5 + $0x40] sm:$0xff] %v571
  %700 = vst [vmem:[%s5 + $0x48] sm:$0xff] %v572
  %701 = vst [vmem:[%s5 + $0x50] sm:$0xff] %v573
  %702 = vst [vmem:[%s5 + $0x58] sm:$0xff] %v574
  %703 = vst [vmem:[%s5 + $0x60] sm:$0xff] %v575
  %704 = vst [vmem:[%s5 + $0x68] sm:$0xff] %v576
  %705 = vst [vmem:[%s5 + $0x70] sm:$0xff] %v577
  %706 = vst [vmem:[%s5 + $0x78] sm:$0xff] %v578
  %707 = vst [vmem:[%s5 + $0x80] sm:$0xff] %v579
  %708 = vst [vmem:[%s5 + $0x88] sm:$0xff] %v580
  %709 = vst [vmem:[%s5 + $0x90] sm:$0xff] %v581
  %710 = vst [vmem:[%s5 + $0x98] sm:$0xff] %v582
  %711 = vst [vmem:[%s5 + $0xa0] sm:$0xff] %v583
  %712 = vst [vmem:[%s5 + $0xa8] sm:$0xff] %v584
  %713 = vst [vmem:[%s5 + $0xb0] sm:$0xff] %v585
  %714 = vst [vmem:[%s5 + $0xb8] sm:$0xff] %v586
  %715 = vst [vmem:[%s5 + $0xc0] sm:$0xff] %v587
  %716 = vst [vmem:[%s5 + $0xc8] sm:$0xff] %v588
  %717 = vst [vmem:[%s5 + $0xd0] sm:$0xff] %v589
  %718 = vst [vmem:[%s5 + $0xd8] sm:$0xff] %v590
  %719 = vst [vmem:[%s5 + $0xe0] sm:$0xff] %v591
  %720 = vst [vmem:[%s5 + $0xe8] sm:$0xff] %v592
  %721 = vst [vmem:[%s5 + $0xf0] sm:$0xff] %v593
  %722 = vst [vmem:[%s5 + $0xf8] sm:$0xff] %v594
  %723 = vst [vmem:[%s5 + $0x100] sm:$0xff] %v595
  %724 = vst [vmem:[%s5 + $0x108] sm:$0xff] %v596
  %725 = vst [vmem:[%s5 + $0x110] sm:$0xff] %v597
  %726 = vst [vmem:[%s5 + $0x118] sm:$0xff] %v598
  %727 = vst [vmem:[%s5 + $0x120] sm:$0xff] %v599
  %728 = vst [vmem:[%s5 + $0x128] sm:$0xff] %v600
  %729 = vst [vmem:[%s5 + $0x130] sm:$0xff] %v601
  %730 = vst [vmem:[%s5 + $0x138] sm:$0xff] %v602
  %731 = vst [vmem:[%s5 + $0x140] sm:$0xff] %v603
  %732 = vst [vmem:[%s5 + $0x148] sm:$0xff] %v604
  %733 = vst [vmem:[%s5 + $0x150] sm:$0xff] %v605
  %734 = vst [vmem:[%s5 + $0x158] sm:$0xff] %v606
  %735 = vst [vmem:[%s5 + $0x160] sm:$0xff] %v607
  %736 = vst [vmem:[%s5 + $0x168] sm:$0xff] %v608
  %737 = vst [vmem:[%s5 + $0x170] sm:$0xff] %v609
  %738 = vst [vmem:[%s5 + $0x178] sm:$0xff] %v610
  %739 = vst [vmem:[%s5 + $0x180] sm:$0xff] %v611
  %740 = vst [vmem:[%s5 + $0x188] sm:$0xff] %v612
  %741 = vst [vmem:[%s5 + $0x190] sm:$0xff] %v613
  %742 = vst [vmem:[%s5 + $0x198] sm:$0xff] %v614
  %743 = vst [vmem:[%s5 + $0x1a0] sm:$0xff] %v615
  %744 = vst [vmem:[%s5 + $0x1a8] sm:$0xff] %v616
  %745 = vst [vmem:[%s5 + $0x1b0] sm:$0xff] %v617
  %746 = vst [vmem:[%s5 + $0x1b8] sm:$0xff] %v618
  %747 = vst [vmem:[%s5 + $0x1c0] sm:$0xff] %v619
  %748 = vst [vmem:[%s5 + $0x1c8] sm:$0xff] %v620
  %749 = vst [vmem:[%s5 + $0x1d0] sm:$0xff] %v621
  %750 = vst [vmem:[%s5 + $0x1d8] sm:$0xff] %v622
  %751 = vst [vmem:[%s5 + $0x1e0] sm:$0xff] %v623
  %752 = vst [vmem:[%s5 + $0x1e8] sm:$0xff] %v624
  %753 = vst [vmem:[%s5 + $0x1f0] sm:$0xff] %v625
  %754 = vst [vmem:[%s5 + $0x1f8] sm:$0xff] %v626
  %755 = vst [vmem:[%s5 + $0x200] sm:$0xff] %v627
  %756 = vst [vmem:[%s5 + $0x208] sm:$0xff] %v628
  %757 = vst [vmem:[%s5 + $0x210] sm:$0xff] %v629
  %758 = vst [vmem:[%s5 + $0x218] sm:$0xff] %v630
  %759 = vst [vmem:[%s5 + $0x220] sm:$0xff] %v631
  %760 = vst [vmem:[%s5 + $0x228] sm:$0xff] %v632
  %761 = vst [vmem:[%s5 + $0x230] sm:$0xff] %v633
  %762 = vst [vmem:[%s5 + $0x238] sm:$0xff] %v634
  %763 = vst [vmem:[%s5 + $0x240] sm:$0xff] %v635
  %764 = vst [vmem:[%s5 + $0x248] sm:$0xff] %v636
  %765 = vst [vmem:[%s5 + $0x250] sm:$0xff] %v637
  %766 = vst [vmem:[%s5 + $0x258] sm:$0xff] %v638
  %767 = vst [vmem:[%s5 + $0x260] sm:$0xff] %v639
  %768 = vst [vmem:[%s5 + $0x268] sm:$0xff] %v640
  %769 = vst [vmem:[%s5 + $0x270] sm:$0xff] %v641
  %770 = vst [vmem:[%s5 + $0x278] sm:$0xff] %v642
  %771 = vst [vmem:[%s5 + $0x280] sm:$0xff] %v643
  %772 = vst [vmem:[%s5 + $0x288] sm:$0xff] %v644
  %773 = vst [vmem:[%s5 + $0x290] sm:$0xff] %v645
  %774 = vst [vmem:[%s5 + $0x298] sm:$0xff] %v646
  %775 = vst [vmem:[%s5 + $0x2a0] sm:$0xff] %v647
  %776 = vst [vmem:[%s5 + $0x2a8] sm:$0xff] %v648
  %777 = vst [vmem:[%s5 + $0x2b0] sm:$0xff] %v649
  %778 = vst [vmem:[%s5 + $0x2b8] sm:$0xff] %v650
  %779 = vst [vmem:[%s5 + $0x2c0] sm:$0xff] %v651
  %780 = vst [vmem:[%s5 + $0x2c8] sm:$0xff] %v652
  %781 = vst [vmem:[%s5 + $0x2d0] sm:$0xff] %v653
  %782 = vst [vmem:[%s5 + $0x2d8] sm:$0xff] %v654
  %783 = vst [vmem:[%s5 + $0x2e0] sm:$0xff] %v655
  %784 = vst [vmem:[%s5 + $0x2e8] sm:$0xff] %v656
  %785 = vst [vmem:[%s5 + $0x2f0] sm:$0xff] %v657
  %786 = vst [vmem:[%s5 + $0x2f8] sm:$0xff] %v658
  %787 = vst [vmem:[%s5 + $0x300] sm:$0xff] %v659
  %788 = vst [vmem:[%s5 + $0x308] sm:$0xff] %v660
  %789 = vst [vmem:[%s5 + $0x310] sm:$0xff] %v661
  %790 = vst [vmem:[%s5 + $0x318] sm:$0xff] %v662
  %791 = vst [vmem:[%s5 + $0x320] sm:$0xff] %v663
  %792 = vst [vmem:[%s5 + $0x328] sm:$0xff] %v664
  %793 = vst [vmem:[%s5 + $0x330] sm:$0xff] %v665
  %794 = vst [vmem:[%s5 + $0x338] sm:$0xff] %v666
  %795 = vst [vmem:[%s5 + $0x340] sm:$0xff] %v667
  %796 = vst [vmem:[%s5 + $0x348] sm:$0xff] %v668
  %797 = vst [vmem:[%s5 + $0x350] sm:$0xff] %v669
  %798 = vst [vmem:[%s5 + $0x358] sm:$0xff] %v670
  %799 = vst [vmem:[%s5 + $0x360] sm:$0xff] %v671
  %800 = vst [vmem:[%s5 + $0x368] sm:$0xff] %v672
  %801 = vst [vmem:[%s5 + $0x370] sm:$0xff] %v673
  %802 = vst [vmem:[%s5 + $0x378] sm:$0xff] %v674
  %803 = vst [vmem:[%s5 + $0x380] sm:$0xff] %v675
  %804 = vst [vmem:[%s5 + $0x388] sm:$0xff] %v676
  %805 = vst [vmem:[%s5 + $0x390] sm:$0xff] %v677
  %806 = vst [vmem:[%s5 + $0x398] sm:$0xff] %v678
  %807 = vst [vmem:[%s5 + $0x3a0] sm:$0xff] %v679
  %808 = vst [vmem:[%s5 + $0x3a8] sm:$0xff] %v680
  %809 = vst [vmem:[%s5 + $0x3b0] sm:$0xff] %v681
  %810 = vst [vmem:[%s5 + $0x3b8] sm:$0xff] %v682
  %811 = vst [vmem:[%s5 + $0x3c0] sm:$0xff] %v683
  %812 = vst [vmem:[%s5 + $0x3c8] sm:$0xff] %v684
  %813 = vst [vmem:[%s5 + $0x3d0] sm:$0xff] %v685
  %814 = vst [vmem:[%s5 + $0x3d8] sm:$0xff] %v686
  %815 = vst [vmem:[%s5 + $0x3e0] sm:$0xff] %v687
  %816 = vst [vmem:[%s5 + $0x3e8] sm:$0xff] %v688
  %817 = vst [vmem:[%s5 + $0x3f0] sm:$0xff] %v689
  %818 = vst [vmem:[%s5 + $0x3f8] sm:$0xff] %v690
  // Predicated region
  $region22: #{se_layer.1} parent=0 // pred_check
    _
  $region23: #{se_layer.1} parent=0 // pred_check_branch
    %820 = sbr.rel (0) target = $region25
  $region24: #{se_layer.1} parent=0 // pred_region
    _
  $region25: #{se_layer.1} parent=0 // pred_fallthru
    _
  // Predicated region
  $region26: #{se_layer.1} parent=0 // pred_check
    _
  $region27: #{se_layer.1} parent=0 // pred_check_branch
    %822 = sbr.rel (0) target = $region29
  $region28: #{se_layer.1} parent=0 // pred_region
    _
  $region29: #{se_layer.1} parent=0 // pred_fallthru
    _

</llo_original>
